<compile_context>
chip_gen: v7x
topology: tpu7x:2x2x1
jax: 0.10.0
libtpu: 0.0.40
codegen_flags: <defaults>
</compile_context>

<pallas_src>
import math
from functools import partial

import jax
import jax.numpy as jnp
from jax import lax
from jax.experimental import pallas as pl
from jax.experimental.pallas import tpu as pltpu


def _round_up(a, b):
    return (a + b - 1) // b * b


def _armsoftmax_kernel(xs_ref, w_ref, t_ref, lbl_ref,      # inputs
                       loss_ref, corr_ref,                 # outputs
                       m_sc, l_sc,                         # scratch
                       *, n_class, needs_mask):
    """One (B-tile, C-tile) grid step of the ARMSoftmax forward pass.

    xs_ref : (TB, D)  bf16   s * x / ||x||_row      (pre-scaled in wrapper)
    w_ref  : (D, TC)  bf16   W / ||W||_col          (pre-normalised in wrapper)
    t_ref  : (TB, 1)  f32    s * (cos(x, w_label) - m)
    lbl_ref: (TB, 1)  i32    class labels
    """
    j = pl.program_id(1)
    n_c_steps = pl.num_programs(1)
    TB = xs_ref.shape[0]
    TC = w_ref.shape[1]

    # ------------------------------------------------------------- init ----
    @pl.when(j == 0)
    def _init():
        m_sc[...] = jnp.full_like(m_sc, -1e30)
        l_sc[...] = jnp.zeros_like(l_sc)

    # ----------------------------------------------------------- C tile ----
    # bf16 operands on the MXU, f32 accumulation.  Both operands are already
    # normalised/scaled, so `logits` needs no post-matmul scaling.
    logits = jnp.dot(xs_ref[...], w_ref[...],
                     preferred_element_type=jnp.float32)          # (TB, TC)

    t = t_ref[...]                                                # (TB, 1)
    col_ids = j * TC + lax.broadcasted_iota(jnp.int32, (TB, TC), 1)
    one_hot = col_ids == lbl_ref[...]

    # relu-mask against the label logit; the label column is always kept at
    # exactly t (its "reduct" is identically 0 in the reference).
    kept = jnp.where(logits < t, 0.0, logits)
    kept = jnp.where(one_hot, t, kept)
    if needs_mask:                                # static: only if C % TC != 0
        kept = jnp.where(col_ids < n_class, kept, -1e30)

    # Online softmax (running max / running sum-exp).
    blk_max = jnp.max(kept, axis=1, keepdims=True)                # (TB, 1)
    m_new = jnp.maximum(m_sc[...], blk_max)
    l_sc[...] = (l_sc[...] * jnp.exp(m_sc[...] - m_new)
                 + jnp.sum(jnp.exp(kept - m_new), axis=1, keepdims=True))
    m_sc[...] = m_new

    # -------------------------------------------------------- finalize -----
    @pl.when(j == n_c_steps - 1)
    def _finalize():
        lse = m_sc[...] + jnp.log(l_sc[...])
        loss_ref[...] = lse - t                                   # per-ex CE
        # The label column is pinned at exactly t, so the running max is >= t
        # and the prediction is correct iff nothing else exceeded it.
        corr_ref[...] = (m_sc[...] <= t).astype(jnp.float32)


def _default_block_b():
    """TB=256 matches the 256x256 MXU on v6e/v7x; v5e (4x128^2) prefers 128."""
    try:
        kind = jax.devices()[0].device_kind.lower()
        if ("v5 lite" in kind) or ("v5e" in kind) or ("v5litepod" in kind):
            return 128
    except Exception:
        pass
    return 256


def armsoftmax_forward(x, W, label, m=0.2, s=30.0, block_b=None, block_c=1024):
    """x: (B, D) f32, W: (D, C) f32, label: (B,) int -> (mean CE loss, prec1 %)."""
    x = x.astype(jnp.float32)
    W = W.astype(jnp.float32)
    label = label.astype(jnp.int32)

    B, D = x.shape
    C = W.shape[1]

    if block_b is None:
        block_b = _default_block_b()

    # ---- tile sizes: sublane-aligned B tiles, lane-dense (128k) C tiles ----
    TB = min(block_b, _round_up(B, 16))      # 16: bf16 packs 2 rows / sublane
    B_pad = _round_up(B, TB)
    C_lane = _round_up(C, 128)
    TC = min(block_c, C_lane)
    C_pad = _round_up(C, TC)
    n_b = B_pad // TB
    n_c = C_pad // TC
    needs_mask = (C_pad != C)

    # ---- one-time f32 normalisation / label-logit prep (tiny XLA ops) ------
    # clamp(min=1e-12) on the norm == clamp(min=1e-24) on the sum of squares.
    inv_x = lax.rsqrt(jnp.maximum(jnp.sum(x * x, axis=1, keepdims=True), 1e-24))
    inv_w = lax.rsqrt(jnp.maximum(jnp.sum(W * W, axis=0, keepdims=True), 1e-24))
    x_n = x * inv_x                                               # (B, D) f32
    w_n = W * inv_w                                               # (D, C) f32

    # Label-column logit t = s * (cos(x, w_label) - m), computed in f32.
    # jnp.take along axis=1 avoids materialising a (C, D) transpose of W.
    w_lab = jnp.take(w_n, label, axis=1)                          # (D, B)
    cos_lab = jnp.einsum('bd,db->b', x_n, w_lab)                  # (B,)
    t = (s * (cos_lab - m)).reshape(-1, 1).astype(jnp.float32)    # (B, 1)

    xs_bf = (s * x_n).astype(jnp.bfloat16)                        # matmul LHS
    wn_bf = w_n.astype(jnp.bfloat16)                              # matmul RHS

    # ---- padding (pure layout plumbing) -------------------------------------
    xs_p = jnp.pad(xs_bf, ((0, B_pad - B), (0, 0)))
    w_p = jnp.pad(wn_bf, ((0, 0), (0, C_pad - C)))
    t_p = jnp.pad(t, ((0, B_pad - B), (0, 0)))
    lbl_p = jnp.pad(label.reshape(-1, 1), ((0, B_pad - B), (0, 0)))

    kernel = partial(_armsoftmax_kernel, n_class=C, needs_mask=needs_mask)

    grid_spec = pltpu.PrefetchScalarGridSpec(
        num_scalar_prefetch=0,
        grid=(n_b, n_c),
        in_specs=[
            pl.BlockSpec((TB, D), lambda i, j: (i, 0)),     # s*x/||x||  (bf16)
            pl.BlockSpec((D, TC), lambda i, j: (0, j)),     # W/||W||    (bf16)
            pl.BlockSpec((TB, 1), lambda i, j: (i, 0)),     # label logit t
            pl.BlockSpec((TB, 1), lambda i, j: (i, 0)),     # labels
        ],
        out_specs=[
            pl.BlockSpec((TB, 1), lambda i, j: (i, 0)),     # per-ex loss
            pl.BlockSpec((TB, 1), lambda i, j: (i, 0)),     # per-ex hit
        ],
        scratch_shapes=[
            pltpu.VMEM((TB, 1), jnp.float32),   # running max
            pltpu.VMEM((TB, 1), jnp.float32),   # running sum-exp
        ],
    )

    # VMEM budget from actual tile needs (double-buffered inputs) + headroom;
    # stays far below v7x's 64 MiB physical VMEM and plenty for v5e/v6e.
    vmem_need = (2 * D * TC * 2            # W tiles (bf16, double-buffered)
                 + 2 * TB * D * 2          # x tiles (bf16, double-buffered)
                 + 12 * TB * 4)            # t / labels / outputs / scratch
    vmem_limit = int(min(max(2 * vmem_need, 16 * 1024 * 1024),
                         48 * 1024 * 1024))

    per_ex_loss, per_ex_correct = pl.pallas_call(
        kernel,
        grid_spec=grid_spec,
        out_shape=(jax.ShapeDtypeStruct((B_pad, 1), jnp.float32),
                   jax.ShapeDtypeStruct((B_pad, 1), jnp.float32)),
        compiler_params=pltpu.CompilerParams(
            dimension_semantics=("parallel", "arbitrary"),
            vmem_limit_bytes=vmem_limit),
    )(xs_p, w_p, t_p, lbl_p)

    loss = jnp.sum(per_ex_loss[:B, 0]) / B
    prec1 = 100.0 * jnp.sum(per_ex_correct[:B, 0]) / B
    return loss, prec1


if __name__ == "__main__":
    # Small, module-consistent shapes: batch=8, embedding_dim=192, n_class=16.
    B, D, C = 8, 192, 16
    m, s = 0.2, 30.0

    key = jax.random.PRNGKey(0)
    kx, kw, kl = jax.random.split(key, 3)

    x = jax.random.normal(kx, (B, D), dtype=jnp.float32)

    # xavier_normal_(W, gain=1): std = sqrt(2 / (fan_in + fan_out))
    std = math.sqrt(2.0 / (D + C))
    W = std * jax.random.normal(kw, (D, C), dtype=jnp.float32)

    label = jax.random.randint(kl, (B,), 0, C, dtype=jnp.int32)

    loss, prec1 = armsoftmax_forward(x, W, label, m=m, s=s)
    jax.block_until_ready((loss, prec1))

    print("KERNEL_OK")
</pallas_src>

<mosaic_0001>
module attributes {stable_mosaic.version = 11 : i64} {
  func.func @_armsoftmax_kernel(%arg0: i32, %arg1: i32, %arg2: memref<16x192xbf16, #tpu.memory_space<vmem>>, %arg3: memref<192x128xbf16, #tpu.memory_space<vmem>>, %arg4: memref<16x1xf32, #tpu.memory_space<vmem>>, %arg5: memref<16x1xi32, #tpu.memory_space<vmem>>, %arg6: memref<16x1xf32, #tpu.memory_space<vmem>>, %arg7: memref<16x1xf32, #tpu.memory_space<vmem>>, %arg8: memref<16x1xf32, #tpu.memory_space<vmem>>, %arg9: memref<16x1xf32, #tpu.memory_space<vmem>>) attributes {dimension_semantics = [#tpu.dimension_semantics<parallel>, #tpu.dimension_semantics<arbitrary>], iteration_bounds = array<i64: 1, 1>, scalar_prefetch = 0 : i64, scratch_operands = 2 : i64, tpu.core_type = #tpu.core_type<tc>, window_params = [{transform_indices = @transform_0, window_bounds = array<i64: 16, 192>}, {transform_indices = @transform_1, window_bounds = array<i64: 192, 128>}, {transform_indices = @transform_2, window_bounds = array<i64: 16, 1>}, {transform_indices = @transform_3, window_bounds = array<i64: 16, 1>}, {transform_indices = @transform_4, window_bounds = array<i64: 16, 1>}, {transform_indices = @transform_5, window_bounds = array<i64: 16, 1>}]} {
    %c0_i32 = arith.constant 0 : i32
    %0 = arith.cmpi eq, %arg1, %c0_i32 : i32
    %1 = arith.extui %0 : i1 to i32
    %c0_i32_0 = arith.constant 0 : i32
    %2 = arith.cmpi ne, %1, %c0_i32_0 : i32
    scf.if %2 {
      %cst_24 = arith.constant -1.000000e+30 : f32
      %45 = vector.broadcast %cst_24 : f32 to vector<16x1xf32>
      %c0_25 = arith.constant 0 : index
      %c0_26 = arith.constant 0 : index
      %46 = vector.load %arg8[%c0_25, %c0_26] : memref<16x1xf32, #tpu.memory_space<vmem>>, vector<16x1xf32>
      tpu.vector_store %arg8[%c0_25, %c0_26], %45 {strides = array<i32>} : memref<16x1xf32, #tpu.memory_space<vmem>>, vector<16x1xf32>,
      %cst_27 = arith.constant 0.000000e+00 : f32
      %47 = vector.broadcast %cst_27 : f32 to vector<16x1xf32>
      %c0_28 = arith.constant 0 : index
      %c0_29 = arith.constant 0 : index
      %48 = vector.load %arg9[%c0_28, %c0_29] : memref<16x1xf32, #tpu.memory_space<vmem>>, vector<16x1xf32>
      tpu.vector_store %arg9[%c0_28, %c0_29], %47 {strides = array<i32>} : memref<16x1xf32, #tpu.memory_space<vmem>>, vector<16x1xf32>,
    } else {
    }
    %c0 = arith.constant 0 : index
    %c0_1 = arith.constant 0 : index
    %3 = vector.load %arg2[%c0, %c0_1] : memref<16x192xbf16, #tpu.memory_space<vmem>>, vector<16x192xbf16>
    %c0_2 = arith.constant 0 : index
    %c0_3 = arith.constant 0 : index
    %4 = vector.load %arg3[%c0_2, %c0_3] : memref<192x128xbf16, #tpu.memory_space<vmem>>, vector<192x128xbf16>
    %cst = arith.constant dense<0.000000e+00> : vector<16x128xf32>
    %5 = tpu.matmul %3, %4, %cst {dimension_numbers = #tpu.dot_dimension_numbers<[1], [0], [0], [1], [0, 0, 1, 1], [], []>} : vector<16x192xbf16>, vector<192x128xbf16>, vector<16x128xf32> -> vector<16x128xf32>
    %c0_4 = arith.constant 0 : index
    %c0_5 = arith.constant 0 : index
    %6 = vector.load %arg4[%c0_4, %c0_5] : memref<16x1xf32, #tpu.memory_space<vmem>>, vector<16x1xf32>
    %c128_i32 = arith.constant 128 : i32
    %7 = arith.muli %arg1, %c128_i32 : i32
    %8 = tpu.iota {dimensions = array<i32: 1>} : vector<16x128xi32>
    %9 = vector.broadcast %7 : i32 to vector<16x128xi32>
    %10 = arith.addi %9, %8 : vector<16x128xi32>
    %c0_6 = arith.constant 0 : index
    %c0_7 = arith.constant 0 : index
    %11 = vector.load %arg5[%c0_6, %c0_7] : memref<16x1xi32, #tpu.memory_space<vmem>>, vector<16x1xi32>
    %12 = vector.broadcast %11 : vector<16x1xi32> to vector<16x128xi32>
    %13 = arith.cmpi eq, %10, %12 : vector<16x128xi32>
    %14 = vector.broadcast %6 : vector<16x1xf32> to vector<16x128xf32>
    %15 = arith.cmpf olt, %5, %14 : vector<16x128xf32>
    %cst_8 = arith.constant 0.000000e+00 : f32
    %16 = vector.broadcast %cst_8 : f32 to vector<16x128xf32>
    %17 = arith.select %15, %16, %5 : vector<16x128xi1>, vector<16x128xf32>
    %18 = vector.shape_cast %6 : vector<16x1xf32> to vector<16x1xf32>
    %19 = vector.broadcast %18 : vector<16x1xf32> to vector<16x128xf32>
    %20 = arith.select %13, %19, %17 : vector<16x128xi1>, vector<16x128xf32>
    %c16_i32 = arith.constant 16 : i32
    %21 = vector.broadcast %c16_i32 : i32 to vector<16x128xi32>
    %22 = arith.cmpi slt, %10, %21 : vector<16x128xi32>
    %cst_9 = arith.constant -1.000000e+30 : f32
    %23 = vector.broadcast %cst_9 : f32 to vector<16x128xf32>
    %24 = arith.select %22, %20, %23 : vector<16x128xi1>, vector<16x128xf32>
    %cst_10 = arith.constant dense<0xFF800000> : vector<16xf32>
    %25 = vector.multi_reduction <maximumf>, %24, %cst_10 [1] : vector<16x128xf32> to vector<16xf32>
    %26 = vector.shape_cast %25 : vector<16xf32> to vector<16x1xf32>
    %c0_11 = arith.constant 0 : index
    %c0_12 = arith.constant 0 : index
    %27 = vector.load %arg8[%c0_11, %c0_12] : memref<16x1xf32, #tpu.memory_space<vmem>>, vector<16x1xf32>
    %28 = arith.maximumf %27, %26 : vector<16x1xf32>
    %c0_13 = arith.constant 0 : index
    %c0_14 = arith.constant 0 : index
    %29 = vector.load %arg9[%c0_13, %c0_14] : memref<16x1xf32, #tpu.memory_space<vmem>>, vector<16x1xf32>
    %c0_15 = arith.constant 0 : index
    %c0_16 = arith.constant 0 : index
    %30 = vector.load %arg8[%c0_15, %c0_16] : memref<16x1xf32, #tpu.memory_space<vmem>>, vector<16x1xf32>
    %31 = arith.subf %30, %28 : vector<16x1xf32>
    %32 = math.exp %31 : vector<16x1xf32>
    %33 = arith.mulf %29, %32 : vector<16x1xf32>
    %34 = vector.broadcast %28 : vector<16x1xf32> to vector<16x128xf32>
    %35 = arith.subf %24, %34 : vector<16x128xf32>
    %36 = math.exp %35 : vector<16x128xf32>
    %cst_17 = arith.constant dense<0.000000e+00> : vector<16xf32>
    %37 = vector.multi_reduction <add>, %36, %cst_17 [1] : vector<16x128xf32> to vector<16xf32>
    %38 = vector.shape_cast %37 : vector<16xf32> to vector<16x1xf32>
    %39 = arith.addf %33, %38 : vector<16x1xf32>
    %c0_18 = arith.constant 0 : index
    %c0_19 = arith.constant 0 : index
    %40 = vector.load %arg9[%c0_18, %c0_19] : memref<16x1xf32, #tpu.memory_space<vmem>>, vector<16x1xf32>
    tpu.vector_store %arg9[%c0_18, %c0_19], %39 {strides = array<i32>} : memref<16x1xf32, #tpu.memory_space<vmem>>, vector<16x1xf32>,
    %c0_20 = arith.constant 0 : index
    %c0_21 = arith.constant 0 : index
    %41 = vector.load %arg8[%c0_20, %c0_21] : memref<16x1xf32, #tpu.memory_space<vmem>>, vector<16x1xf32>
    tpu.vector_store %arg8[%c0_20, %c0_21], %28 {strides = array<i32>} : memref<16x1xf32, #tpu.memory_space<vmem>>, vector<16x1xf32>,
    %c0_i32_22 = arith.constant 0 : i32
    %42 = arith.cmpi eq, %arg1, %c0_i32_22 : i32
    %43 = arith.extui %42 : i1 to i32
    %c0_i32_23 = arith.constant 0 : i32
    %44 = arith.cmpi ne, %43, %c0_i32_23 : i32
    scf.if %44 {
      %c0_24 = arith.constant 0 : index
      %c0_25 = arith.constant 0 : index
      %45 = vector.load %arg8[%c0_24, %c0_25] : memref<16x1xf32, #tpu.memory_space<vmem>>, vector<16x1xf32>
      %c0_26 = arith.constant 0 : index
      %c0_27 = arith.constant 0 : index
      %46 = vector.load %arg9[%c0_26, %c0_27] : memref<16x1xf32, #tpu.memory_space<vmem>>, vector<16x1xf32>
      %47 = math.log %46 : vector<16x1xf32>
      %48 = arith.addf %45, %47 : vector<16x1xf32>
      %49 = arith.subf %48, %6 : vector<16x1xf32>
      %c0_28 = arith.constant 0 : index
      %c0_29 = arith.constant 0 : index
      %50 = vector.load %arg6[%c0_28, %c0_29] : memref<16x1xf32, #tpu.memory_space<vmem>>, vector<16x1xf32>
      tpu.vector_store %arg6[%c0_28, %c0_29], %49 {strides = array<i32>} : memref<16x1xf32, #tpu.memory_space<vmem>>, vector<16x1xf32>,
      %c0_30 = arith.constant 0 : index
      %c0_31 = arith.constant 0 : index
      %51 = vector.load %arg8[%c0_30, %c0_31] : memref<16x1xf32, #tpu.memory_space<vmem>>, vector<16x1xf32>
      %52 = arith.cmpf ole, %51, %6 : vector<16x1xf32>
      %53 = arith.extui %52 : vector<16x1xi1> to vector<16x1xi32>
      %54 = arith.sitofp %53 : vector<16x1xi32> to vector<16x1xf32>
      %c0_32 = arith.constant 0 : index
      %c0_33 = arith.constant 0 : index
      %55 = vector.load %arg7[%c0_32, %c0_33] : memref<16x1xf32, #tpu.memory_space<vmem>>, vector<16x1xf32>
      tpu.vector_store %arg7[%c0_32, %c0_33], %54 {strides = array<i32>} : memref<16x1xf32, #tpu.memory_space<vmem>>, vector<16x1xf32>,
    } else {
    }
    return
  }
  func.func @transform_0(%arg0: i32, %arg1: i32) -> (i32, i32) {
    %c0_i32 = arith.constant 0 : i32
    %c0_i32_0 = arith.constant 0 : i32
    return %arg0, %c0_i32 : i32, i32
  }
  func.func @transform_1(%arg0: i32, %arg1: i32) -> (i32, i32) {
    %c0_i32 = arith.constant 0 : i32
    %c0_i32_0 = arith.constant 0 : i32
    return %c0_i32, %arg1 : i32, i32
  }
  func.func @transform_2(%arg0: i32, %arg1: i32) -> (i32, i32) {
    %c0_i32 = arith.constant 0 : i32
    %c0_i32_0 = arith.constant 0 : i32
    return %arg0, %c0_i32 : i32, i32
  }
  func.func @transform_3(%arg0: i32, %arg1: i32) -> (i32, i32) {
    %c0_i32 = arith.constant 0 : i32
    %c0_i32_0 = arith.constant 0 : i32
    return %arg0, %c0_i32 : i32, i32
  }
  func.func @transform_4(%arg0: i32, %arg1: i32) -> (i32, i32) {
    %c0_i32 = arith.constant 0 : i32
    %c0_i32_0 = arith.constant 0 : i32
    return %arg0, %c0_i32 : i32, i32
  }
  func.func @transform_5(%arg0: i32, %arg1: i32) -> (i32, i32) {
    %c0_i32 = arith.constant 0 : i32
    %c0_i32_0 = arith.constant 0 : i32
    return %arg0, %c0_i32 : i32, i32
  }
}

</mosaic_0001>

<llo_original>
// kernel: tpu_custom_call.1
$region0: #{tpu_custom_call.1}
  #allocation0 [shape = 'u32[]', space=smem, size = 0x4, offset = 0x4, fixed_abs, tag = 'smem constant byte address 0x4 - core index']
  #allocation1 [shape = 'u32[144,128]{1,0:T(1,128)}', space=vmem, size = 0x12000, scoped, tag = 'internal scratch']
  #allocation2 [shape = 'f32[16,1]{1,0:T(8,128)}', space=vmem, size = 0x2000, scoped, tag = 'scratch operand']
  #allocation3 [shape = 'f32[16,1]{1,0:T(8,128)}', space=vmem, size = 0x2000, scoped, tag = 'scratch operand']
  %s0 = inlined_call_operand.vmem [shape: bf16[16,192], index: 0, kind: input, shape index: {}]
  %s1 = inlined_call_operand.hbm [shape: bf16[192,128], index: 1, kind: input, shape index: {}]
  %s2 = inlined_call_operand.vmem [shape: f32[16,1], index: 2, kind: input, shape index: {}]
  %s3 = inlined_call_operand.vmem [shape: s32[16,1], index: 3, kind: input, shape index: {}]
  %s4 = inlined_call_operand.vmem [shape: f32[16,1], index: 4, kind: output, shape index: {0}]
  %s5 = inlined_call_operand.vmem [shape: f32[16,1], index: 5, kind: output, shape index: {1}]
  %6 = xla_tuple %s4, %s5
  %s7 = sld [smem:[#allocation0]]
  $region46: #{tpu_custom_call.1} parent=0
    _
  %s9 = ssub.s32 1, %s7
  %s10 = scalar_select 0, %s9, %s7
  $region1: #{tpu_custom_call.1} parent=0
    #allocation4 [shape = 'u8[49152]{0}', space=vmem, size = 0xc000, scoped, tag = 'input window, operand 1, single buffered']
    #allocation5 [shape = 's32[1]{0}', space=sflag, size = 0x4, scoped, tag = 'scoped memory for tpu_custom_call.1']
    %11 = vsyncpa [#allocation5], 0
    // Predicated region
    $region2: #{tpu_custom_call.1} parent=1 // pred_check
      _
    $region3: #{tpu_custom_call.1} parent=1 // pred_check_branch
      %13 = sbr.rel (0) target = $region5
    $region4: #{tpu_custom_call.1} parent=1 // pred_region
      _
    $region5: #{tpu_custom_call.1} parent=1 // pred_fallthru
      _
    // Predicated region
    $region6: #{tpu_custom_call.1} parent=1 // pred_check
      _
    $region7: #{tpu_custom_call.1} parent=1 // pred_check_branch
      %15 = sbr.rel (0) target = $region9
    $region8: #{tpu_custom_call.1} parent=1 // pred_region
      %s17 = ssub.s32 1536, 1536
      %18 = vsyncadd [#allocation5], %s17
      %s19 = sshll.u32 [#allocation4], 4
      %s20 = int_to_ptr.vmem [resolvable:$true] %s19
      %25 = dma.hbm_to_vmem [thread:$0]  %s1, 1536, %s20, [#allocation5], 64, 64, 4
    $region9: #{tpu_custom_call.1} parent=1 // pred_fallthru
      _
    // Predicated region
    $region10: #{tpu_custom_call.1} parent=1 // pred_check
      _
    $region11: #{tpu_custom_call.1} parent=1 // pred_check_branch
      %27 = sbr.rel (0) target = $region13
    $region12: #{tpu_custom_call.1} parent=1 // pred_region
      _
    $region13: #{tpu_custom_call.1} parent=1 // pred_fallthru
      _
    // Predicated region
    $region14: #{tpu_custom_call.1} parent=1 // pred_check
      _
    $region15: #{tpu_custom_call.1} parent=1 // pred_check_branch
      %29 = sbr.rel (0) target = $region17
    $region16: #{tpu_custom_call.1} parent=1 // pred_region
      _
    $region17: #{tpu_custom_call.1} parent=1 // pred_fallthru
      _
    // Predicated region
    $region18: #{tpu_custom_call.1} parent=1 // pred_check
      _
    $region19: #{tpu_custom_call.1} parent=1 // pred_check_branch
      %31 = sbr.rel (0) target = $region21
    $region20: #{tpu_custom_call.1} parent=1 // pred_region
      %32 = dma.done [#allocation5], 1536
    $region21: #{tpu_custom_call.1} parent=1 // pred_fallthru
      _
    %p34 = scmp.eq.s32.totalorder 0, 0
    // Predicated region
    $region22: #{tpu_custom_call.1} parent=1 // pred_check
      %p35 = pneg %p34
    $region23: #{tpu_custom_call.1} parent=1 // pred_check_branch
      %37 = sbr.rel (%p35) target = $region25
    $region24: #{tpu_custom_call.1} parent=1 // pred_region
      %vm38 = vcmask 7168
      %39 = vst.msk [vmem:[#allocation2] sm:$0xff] %vm38, -1e+30
      %40 = vst.msk [vmem:[#allocation2 + $0x8] sm:$0xff] %vm38, -1e+30
      %41 = vst.msk [vmem:[#allocation3] sm:$0xff] %vm38, 0.0
      %42 = vst.msk [vmem:[#allocation3 + $0x8] sm:$0xff] %vm38, 0.0
    $region25: #{tpu_custom_call.1} parent=1 // pred_fallthru
      _
    %v43 = vld [vmem:[%s0] sm:$0xff]
    %v44 = vld [vmem:[%s0 + $0x8] sm:$0xff]
    %v45 = vld [vmem:[#allocation4] sm:$0xf]
    %v46 = vld [vmem:[#allocation4 + $0x4] sm:$0xf]
    %v47 = vld [vmem:[#allocation4 + $0x8] sm:$0xf]
    %v48 = vld [vmem:[#allocation4 + $0xc] sm:$0xf]
    %v49 = vld [vmem:[#allocation4 + $0x10] sm:$0xf]
    %v50 = vld [vmem:[#allocation4 + $0x14] sm:$0xf]
    %v51 = vld [vmem:[#allocation4 + $0x18] sm:$0xf]
    %v52 = vld [vmem:[#allocation4 + $0x1c] sm:$0xf]
    %v53 = vld [vmem:[#allocation4 + $0x20] sm:$0xf]
    %v54 = vld [vmem:[#allocation4 + $0x24] sm:$0xf]
    %v55 = vld [vmem:[#allocation4 + $0x28] sm:$0xf]
    %v56 = vld [vmem:[#allocation4 + $0x2c] sm:$0xf]
    %v57 = vld [vmem:[#allocation4 + $0x30] sm:$0xf]
    %v58 = vld [vmem:[#allocation4 + $0x34] sm:$0xf]
    %v59 = vld [vmem:[#allocation4 + $0x38] sm:$0xf]
    %v60 = vld [vmem:[#allocation4 + $0x3c] sm:$0xf]
    %v61 = vld [vmem:[#allocation4 + $0x40] sm:$0xf]
    %v62 = vld [vmem:[#allocation4 + $0x44] sm:$0xf]
    %v63 = vld [vmem:[#allocation4 + $0x48] sm:$0xf]
    %v64 = vld [vmem:[#allocation4 + $0x4c] sm:$0xf]
    %v65 = vld [vmem:[#allocation4 + $0x50] sm:$0xf]
    %v66 = vld [vmem:[#allocation4 + $0x54] sm:$0xf]
    %v67 = vld [vmem:[#allocation4 + $0x58] sm:$0xf]
    %v68 = vld [vmem:[#allocation4 + $0x5c] sm:$0xf]
    %v71 = vunpack.c.l.b16 %v43
    %v72 = vunpack.c.h.b16 %v43
    %v73 = vunpack.c.l.b16 %v44
    %v74 = vunpack.c.h.b16 %v44
    %v75 = vpack.c.b16 %v73, %v71
    %v76 = vpack.c.b16 %v74, %v72
    %v102 = vunpack.c.l.b16 %v45
    %v103 = vunpack.c.l.b16 %v46
    %v104 = vunpack.c.l.b16 %v47
    %v105 = vunpack.c.l.b16 %v48
    %v106 = vunpack.c.l.b16 %v49
    %v107 = vunpack.c.l.b16 %v50
    %v108 = vunpack.c.l.b16 %v51
    %v109 = vunpack.c.l.b16 %v52
    %v110 = vunpack.c.l.b16 %v53
    %v111 = vunpack.c.l.b16 %v54
    %v112 = vunpack.c.l.b16 %v55
    %v113 = vunpack.c.l.b16 %v56
    %v114 = vunpack.c.l.b16 %v57
    %v115 = vunpack.c.l.b16 %v58
    %v116 = vunpack.c.l.b16 %v59
    %v117 = vunpack.c.l.b16 %v60
    %v118 = vunpack.c.l.b16 %v61
    %v119 = vunpack.c.l.b16 %v62
    %v120 = vunpack.c.l.b16 %v63
    %v121 = vunpack.c.l.b16 %v64
    %v122 = vunpack.c.l.b16 %v65
    %v123 = vunpack.c.l.b16 %v66
    %v124 = vunpack.c.l.b16 %v67
    %v125 = vunpack.c.l.b16 %v68
    %v126 = vpack.c.b16 %v103, %v102
    %v127 = vpack.c.b16 %v105, %v104
    %v128 = vpack.c.b16 %v107, %v106
    %v129 = vpack.c.b16 %v109, %v108
    %v130 = vpack.c.b16 %v111, %v110
    %v131 = vpack.c.b16 %v113, %v112
    %v132 = vpack.c.b16 %v115, %v114
    %v133 = vpack.c.b16 %v117, %v116
    %v134 = vpack.c.b16 %v119, %v118
    %v135 = vpack.c.b16 %v121, %v120
    %v136 = vpack.c.b16 %v123, %v122
    %v137 = vpack.c.b16 %v125, %v124
    %vm150 = vcmask 523264
    %v152 = vsel %vm150, %v76, 0
    %154 = vmatprep.subr.bf16.mxu0 0
    %155 = vmatpush1.bf16.msra.mxu0 %v126
    %156 = vmatprep.subr.bf16.mxu0 0
    %157 = vmatpush1.bf16.msra.mxu0 %v127
    %158 = vmatprep.subr.bf16.mxu0 0
    %159 = vmatpush1.bf16.msra.mxu0 %v128
    %160 = vmatprep.subr.bf16.mxu0 0
    %161 = vmatpush1.bf16.msra.mxu0 %v129
    %162 = vmatprep.subr.bf16.mxu0 0
    %163 = vmatpush1.bf16.msra.mxu0 %v130
    %164 = vmatprep.subr.bf16.mxu0 0
    %165 = vmatpush1.bf16.msra.mxu0 %v131
    %166 = vmatprep.subr.bf16.mxu0 0
    %167 = vmatpush1.bf16.msra.mxu0 %v132
    %168 = vmatprep.subr.bf16.mxu0 0
    %169 = vmatpush1.bf16.msra.mxu0 %v133
    %170 = vmatprep.subr.bf16.mxu0 0
    %171 = vmatpush1.bf16.msra.mxu0 %v134
    %172 = vmatprep.subr.bf16.mxu0 0
    %173 = vmatpush1.bf16.msra.mxu0 %v135
    %174 = vmatprep.subr.bf16.mxu0 0
    %175 = vmatpush1.bf16.msra.mxu0 %v136
    %176 = vmatprep.subr.bf16.mxu0 0
    %177 = vmatpush1.bf16.msra.mxu0 %v137
    %178 = vmatprep.subr.bf16.mxu0 0
    %179 = vmatpush1.bf16.msra.mxu0 0
    %180 = vmatprep.subr.bf16.mxu0 0
    %181 = vmatpush1.bf16.msra.mxu0 0
    %182 = vmatprep.subr.bf16.mxu0 0
    %183 = vmatpush1.bf16.msra.mxu0 0
    %184 = vmatprep.subr.bf16.mxu0 0
    %185 = vmatpush1.bf16.msra.mxu0 0
    %186 = vmatprep.mubr.bf16.mxu0 %v152
    %187 = vmatmul.mubr.bf16.gmra.mrb[0].mxu0 %v75
    %v188 = vpop.f32.mrb[0].mxu0
    %v189 = vadd.f32 0.0, %v188
    %v190 = vpop.f32.mrb[0].mxu0
    %v191 = vpop.f32.mrb[0].mxu0
    %v192 = vadd.f32 0.0, %v191
    %v193 = vpop.f32.mrb[0].mxu0
    %194 = vdwg.mxu0
    %v195 = vld [vmem:[%s2] sm:$0xff]
    %v196 = vld [vmem:[%s2 + $0x8] sm:$0xff]
    %s197 = smul.u32 0, 128
    %v198 = vlaneseq
    %v199 = vand.u32 %v198, 127
    %v200 = vstv %s197
    %v201 = vadd.s32 %v200, %v199
    %v202 = vld [vmem:[%s3] sm:$0xff]
    %v203 = vld [vmem:[%s3 + $0x8] sm:$0xff]
    %204 = vset.pattern.permute.xlu0 0
    %205 = vperm.xlu0 %204, %v202
    %v206 = vpop.permute.xlu0 %205
    %207 = vset.pattern.permute.xlu0 0
    %208 = vperm.xlu0 %207, %v203
    %v209 = vpop.permute.xlu0 %208
    %vm210 = vcmp.eq.s32.totalorder %v201, %v206
    %vm211 = vcmp.eq.s32.totalorder %v201, %v209
    %213 = vset.pattern.permute.xlu0 0
    %214 = vperm.xlu0 %213, %v195
    %v215 = vpop.permute.xlu0 %214
    %218 = vset.pattern.permute.xlu0 0
    %219 = vperm.xlu0 %218, %v196
    %v220 = vpop.permute.xlu0 %219
    %vm222 = vcmp.lt.f32.partialorder %v189, %v215
    %vm223 = vcmp.lt.f32.partialorder %v192, %v220
    %v224 = vsel %vm222, 0.0, %v189
    %v225 = vsel %vm223, 0.0, %v192
    %v226 = vsel %vm210, %v215, %v224
    %v227 = vsel %vm211, %v220, %v225
    %vm228 = vcmp.lt.s32.totalorder %v201, 16
    %v229 = vsel %vm228, %v226, -1e+30
    %v230 = vsel %vm228, %v227, -1e+30
    %231 = vmax.xlane.f32.xlu0 %v229
    %v232 = vpop.xlane.xlu0 %231
    %233 = vmax.xlane.f32.xlu0 %v230
    %v234 = vpop.xlane.xlu0 %233
    %v235 = vld [vmem:[#allocation2] sm:$0xff]
    %v236 = vld [vmem:[#allocation2 + $0x8] sm:$0xff]
    %v237 = vmax.f32 %v235, %v232
    %v238 = vmax.f32 %v236, %v234
    %v239 = vld [vmem:[#allocation3] sm:$0xff]
    %v240 = vld [vmem:[#allocation3 + $0x8] sm:$0xff]
    %v241 = vsub.f32 %v235, %v237
    %v242 = vsub.f32 %v236, %v238
    %v243 = vmul.f32 %v241, 1.442695
    %v244 = vpow.pop %v243
    %v245 = vmul.f32 %v242, 1.442695
    %v246 = vpow.pop %v245
    %v247 = vmul.f32 %v239, %v244
    %v248 = vmul.f32 %v240, %v246
    %250 = vset.pattern.permute.xlu0 0
    %251 = vperm.xlu0 %250, %v237
    %v252 = vpop.permute.xlu0 %251
    %255 = vset.pattern.permute.xlu0 0
    %256 = vperm.xlu0 %255, %v238
    %v257 = vpop.permute.xlu0 %256
    %v259 = vsub.f32 %v229, %v252
    %v260 = vsub.f32 %v230, %v257
    %v261 = vmul.f32 %v259, 1.442695
    %v262 = vpow.pop %v261
    %v263 = vmul.f32 %v260, 1.442695
    %v264 = vpow.pop %v263
    %265 = vadd.xlane.f32.xlu0 %v262
    %v266 = vpop.xlane.xlu0 %265
    %267 = vadd.xlane.f32.xlu0 %v264
    %v268 = vpop.xlane.xlu0 %267
    %v269 = vadd.f32 %v247, %v266
    %v270 = vadd.f32 %v248, %v268
    %vm271 = vcmask 7168
    %272 = vst.msk [vmem:[#allocation3] sm:$0xff] %vm271, %v269
    %273 = vst.msk [vmem:[#allocation3 + $0x8] sm:$0xff] %vm271, %v270
    %274 = vst.msk [vmem:[#allocation2] sm:$0xff] %vm271, %v237
    %275 = vst.msk [vmem:[#allocation2 + $0x8] sm:$0xff] %vm271, %v238
    // Predicated region
    $region26: #{tpu_custom_call.1} parent=1 // pred_check
      %p276 = pneg %p34
    $region27: #{tpu_custom_call.1} parent=1 // pred_check_branch
      %278 = sbr.rel (%p276) target = $region29
    $region28: #{tpu_custom_call.1} parent=1 // pred_region
      %v279 = vld [vmem:[#allocation2] sm:$0xff]
      %v280 = vld [vmem:[#allocation2 + $0x8] sm:$0xff]
      %v281 = vld [vmem:[#allocation3] sm:$0xff]
      %v282 = vld [vmem:[#allocation3 + $0x8] sm:$0xff]
      %v283 = vlog2.pop %v281
      %v284 = vmul.f32 %v283, 0.6931472
      %v285 = vlog2.pop %v282
      %v286 = vmul.f32 %v285, 0.6931472
      %v287 = vadd.f32 %v279, %v284
      %v288 = vadd.f32 %v280, %v286
      %v289 = vsub.f32 %v287, %v195
      %v290 = vsub.f32 %v288, %v196
      %291 = vst.msk [vmem:[%s4] sm:$0xff] %vm271, %v289
      %292 = vst.msk [vmem:[%s4 + $0x8] sm:$0xff] %vm271, %v290
      %v293 = vld [vmem:[#allocation2] sm:$0xff]
      %v294 = vld [vmem:[#allocation2 + $0x8] sm:$0xff]
      %vm295 = vcmp.le.f32.partialorder %v293, %v195
      %vm296 = vcmp.le.f32.partialorder %v294, %v196
      %v297 = vsel %vm295, 1, 0
      %v298 = vsel %vm296, 1, 0
      %v299 = vcvt.s32.f32 %v297
      %v300 = vcvt.s32.f32 %v298
      %301 = vst.msk [vmem:[%s5] sm:$0xff] %vm271, %v299
      %302 = vst.msk [vmem:[%s5 + $0x8] sm:$0xff] %vm271, %v300
    $region29: #{tpu_custom_call.1} parent=1 // pred_fallthru
      _
    // Predicated region
    $region30: #{tpu_custom_call.1} parent=1 // pred_check
      _
    $region31: #{tpu_custom_call.1} parent=1 // pred_check_branch
      %304 = sbr.rel (0) target = $region33
    $region32: #{tpu_custom_call.1} parent=1 // pred_region
      _
    $region33: #{tpu_custom_call.1} parent=1 // pred_fallthru
      _
    // Predicated region
    $region34: #{tpu_custom_call.1} parent=1 // pred_check
      _
    $region35: #{tpu_custom_call.1} parent=1 // pred_check_branch
      %306 = sbr.rel (0) target = $region37
    $region36: #{tpu_custom_call.1} parent=1 // pred_region
      _
    $region37: #{tpu_custom_call.1} parent=1 // pred_fallthru
      _
    // Predicated region
    $region38: #{tpu_custom_call.1} parent=1 // pred_check
      _
    $region39: #{tpu_custom_call.1} parent=1 // pred_check_branch
      %308 = sbr.rel (0) target = $region41
    $region40: #{tpu_custom_call.1} parent=1 // pred_region
      _
    $region41: #{tpu_custom_call.1} parent=1 // pred_fallthru
      _
    // Predicated region
    $region42: #{tpu_custom_call.1} parent=1 // pred_check
      _
    $region43: #{tpu_custom_call.1} parent=1 // pred_check_branch
      %310 = sbr.rel (0) target = $region45
    $region44: #{tpu_custom_call.1} parent=1 // pred_region
      _
    $region45: #{tpu_custom_call.1} parent=1 // pred_fallthru
      _
    %311 = vsyncpa [#allocation5], 1

</llo_original>
